<compile_context>
chip_gen: v6e
topology: v6e:2x2x1
jax: 0.10.0
libtpu: 0.0.40
codegen_flags: <defaults>
</compile_context>

<pallas_src>
import jax
import jax.numpy as jnp
from jax import lax
from jax.experimental import pallas as pl
from jax.experimental.pallas import tpu as pltpu


# Tap order t = (dy+1)*3 + (dx+1) == kh*3 + kw (matches the weight reshape below).
_TAPS = [(dy, dx) for dy in (-1, 0, 1) for dx in (-1, 0, 1)]


def _make_kernel(C, H, W, blk):
    """Per-grid-step kernel. blk = batch_block * H * W lanes (channels-major)."""
    K = 9 * C  # rows of the tap-stacked operand (bias row appended at index K)

    def kernel(x_ref, w_ref, m_ref, o_ref, stk_ref):
        # x_ref : (C, blk)      VMEM  channels-major, flattened (n, y, x) lanes
        # w_ref : (C, 9C+1)     VMEM  tap-stacked conv1 weights + bias column
        # m_ref : (9, blk)      VMEM  per-tap zero-padding validity masks
        # o_ref : (C, blk)      VMEM  output block
        # stk_ref:(9C+1, blk)   VMEM scratch: shifted/masked taps + ones row
        x = x_ref[...]
        w = w_ref[...]
        m = m_ref[...]

        # Ones row fuses the bias add into the matmul; written once, shared by
        # both convolutions.
        stk_ref[K:K + 1, :] = jnp.ones((1, blk), jnp.float32)

        def conv(z):
            # Build the (9C, blk) tap stack: tap t holds z shifted by
            # k = dy*W + dx lanes, zeroed where the 3x3 window would have read
            # zero padding (mask also kills wrap-around across image/block
            # boundaries, which only occurs at masked positions).
            for t, (dy, dx) in enumerate(_TAPS):
                k = dy * W + dx
                shifted = pltpu.roll(z, shift=(-k) % blk, axis=1) if k != 0 else z
                stk_ref[t * C:(t + 1) * C, :] = shifted * m[t:t + 1, :]
            # Single MXU matmul: conv + bias, f32 accumulation.
            return jnp.dot(w, stk_ref[...], preferred_element_type=jnp.float32)

        # h = relu(conv1(x) + b);  y = x + conv1(h) + b
        h = jnp.maximum(conv(x), 0.0)
        o_ref[...] = (x + conv(h)).astype(o_ref.dtype)

    return kernel


def _pick_batch_block(N, HW, target_lanes=2048):
    """Largest divisor of N whose block stays ~target_lanes lanes wide."""
    best = 1
    for d in range(1, N + 1):
        if N % d == 0 and d * HW <= target_lanes:
            best = d
    # Lane dim must be a multiple of 128 unless it spans the full array.
    if best != N and (best * HW) % 128 != 0:
        best = N
    return best


@jax.jit
def resnet_layer_forward(x, w, b):
    """x: (N, C, H, W) f32, w: (C, C, 3, 3) f32 (OIHW, conv1), b: (C,) f32."""
    N, C, H, W = x.shape
    HW = H * W
    bb = _pick_batch_block(N, HW)
    blk = bb * HW

    # Layout plumbing (XLA side): channels-major flat-spatial view of x;
    # weights as a (C_out, 9*C_in) tap-stacked matrix with the bias as an
    # extra trailing column (paired with the ones row inside the kernel).
    xt = jnp.transpose(x, (1, 0, 2, 3)).reshape(C, N * HW).astype(jnp.float32)
    # w_stk[co, t*C + ci] = w[co, ci, kh, kw],  t = kh*3 + kw
    w_stk = jnp.transpose(w, (0, 2, 3, 1)).reshape(C, 9 * C)
    w_ext = jnp.concatenate([w_stk, b.reshape(C, 1)], axis=1).astype(jnp.float32)

    # Zero-padding validity masks per tap; identical for every batch block
    # because each block holds whole images.
    flat = jnp.arange(blk, dtype=jnp.int32)
    yy = (flat % HW) // W
    xx = flat % W
    masks = jnp.stack(
        [((yy + dy >= 0) & (yy + dy < H) & (xx + dx >= 0) & (xx + dx < W))
         for dy, dx in _TAPS]).astype(jnp.float32)          # (9, blk)

    kernel = _make_kernel(C, H, W, blk)

    out_flat = pl.pallas_call(
        kernel,
        out_shape=jax.ShapeDtypeStruct((C, N * HW), jnp.float32),
        grid=(N // bb,),
        in_specs=[
            pl.BlockSpec((C, blk), lambda i: (0, i)),
            pl.BlockSpec((C, 9 * C + 1), lambda i: (0, 0)),
            pl.BlockSpec((9, blk), lambda i: (0, 0)),
        ],
        out_specs=pl.BlockSpec((C, blk), lambda i: (0, i)),
        scratch_shapes=[pltpu.VMEM((9 * C + 1, blk), jnp.float32)],
        compiler_params=pltpu.CompilerParams(
            dimension_semantics=("parallel",)),
    )(xt, w_ext, masks)

    return jnp.transpose(out_flat.reshape(C, N, H, W), (1, 0, 2, 3))


def _reference_forward(x, w, b):
    """Pure-JAX reference matching the PyTorch forward (default path)."""
    def conv(z):
        y = lax.conv_general_dilated(
            z, w, window_strides=(1, 1), padding=((1, 1), (1, 1)),
            dimension_numbers=("NCHW", "OIHW", "NCHW"))
        return y + b[None, :, None, None]
    return x + conv(jnp.maximum(conv(x), 0.0))


if __name__ == "__main__":
    key = jax.random.PRNGKey(0)
    kx, kw, kb = jax.random.split(key, 3)

    N, C, H, W = 2, 4, 16, 16
    x = jax.random.normal(kx, (N, C, H, W), dtype=jnp.float32)
    # Deterministic synthetic parameters for conv1 (OIHW) and its bias.
    w = 0.1 * jax.random.normal(kw, (C, C, 3, 3), dtype=jnp.float32)
    b = 0.1 * jax.random.normal(kb, (C,), dtype=jnp.float32)

    y = resnet_layer_forward(x, w, b)
    y = jax.block_until_ready(y)

    y_ref = _reference_forward(x, w, b)
    assert y.shape == (N, C, H, W)
    assert jnp.allclose(y, y_ref, atol=1e-4, rtol=1e-4), "mismatch vs reference"

    print("KERNEL_OK")
</pallas_src>

<mosaic_0001>
module attributes {stable_mosaic.version = 11 : i64} {
  func.func @kernel(%arg0: i32, %arg1: memref<4x512xf32, #tpu.memory_space<vmem>>, %arg2: memref<4x37xf32, #tpu.memory_space<vmem>>, %arg3: memref<9x512xf32, #tpu.memory_space<vmem>>, %arg4: memref<4x512xf32, #tpu.memory_space<vmem>>, %arg5: memref<37x512xf32, #tpu.memory_space<vmem>>) attributes {dimension_semantics = [#tpu.dimension_semantics<parallel>], iteration_bounds = array<i64: 1>, scalar_prefetch = 0 : i64, scratch_operands = 1 : i64, tpu.core_type = #tpu.core_type<tc>, window_params = [{transform_indices = @transform_0, window_bounds = array<i64: 4, 512>}, {pipeline_mode = #tpu.pipeline_mode<synchronous>, transform_indices = @transform_1, window_bounds = array<i64: 4, 37>}, {pipeline_mode = #tpu.pipeline_mode<synchronous>, transform_indices = @transform_2, window_bounds = array<i64: 9, 512>}, {transform_indices = @transform_3, window_bounds = array<i64: 4, 512>}]} {
    %c0 = arith.constant 0 : index
    %c0_0 = arith.constant 0 : index
    %0 = vector.load %arg1[%c0, %c0_0] : memref<4x512xf32, #tpu.memory_space<vmem>>, vector<4x512xf32>
    %c0_1 = arith.constant 0 : index
    %c0_2 = arith.constant 0 : index
    %1 = vector.load %arg2[%c0_1, %c0_2] : memref<4x37xf32, #tpu.memory_space<vmem>>, vector<4x37xf32>
    %c0_3 = arith.constant 0 : index
    %c0_4 = arith.constant 0 : index
    %2 = vector.load %arg3[%c0_3, %c0_4] : memref<9x512xf32, #tpu.memory_space<vmem>>, vector<9x512xf32>
    %cst = arith.constant 1.000000e+00 : f32
    %3 = vector.broadcast %cst : f32 to vector<1x512xf32>
    %c36 = arith.constant 36 : index
    %c0_5 = arith.constant 0 : index
    %4 = vector.load %arg5[%c36, %c0_5] : memref<37x512xf32, #tpu.memory_space<vmem>>, vector<1x512xf32>
    tpu.vector_store %arg5[%c36, %c0_5], %3 {strides = array<i32>} : memref<37x512xf32, #tpu.memory_space<vmem>>, vector<1x512xf32>,
    %c17_i32 = arith.constant 17 : i32
    %5 = tpu.dynamic_rotate %0 by %c17_i32 dim 1 : vector<4x512xf32>, i32 -> vector<4x512xf32>
    %6 = vector.extract_strided_slice %2 {offsets = [0, 0], sizes = [1, 512], strides = [1, 1]} : vector<9x512xf32> to vector<1x512xf32>
    %7 = vector.broadcast %6 : vector<1x512xf32> to vector<4x512xf32>
    %8 = arith.mulf %5, %7 : vector<4x512xf32>
    %c0_6 = arith.constant 0 : index
    %c0_7 = arith.constant 0 : index
    %9 = vector.load %arg5[%c0_6, %c0_7] : memref<37x512xf32, #tpu.memory_space<vmem>>, vector<4x512xf32>
    tpu.vector_store %arg5[%c0_6, %c0_7], %8 {strides = array<i32>} : memref<37x512xf32, #tpu.memory_space<vmem>>, vector<4x512xf32>,
    %c16_i32 = arith.constant 16 : i32
    %10 = tpu.dynamic_rotate %0 by %c16_i32 dim 1 : vector<4x512xf32>, i32 -> vector<4x512xf32>
    %11 = vector.extract_strided_slice %2 {offsets = [1, 0], sizes = [1, 512], strides = [1, 1]} : vector<9x512xf32> to vector<1x512xf32>
    %12 = vector.broadcast %11 : vector<1x512xf32> to vector<4x512xf32>
    %13 = arith.mulf %10, %12 : vector<4x512xf32>
    %c4 = arith.constant 4 : index
    %c0_8 = arith.constant 0 : index
    %14 = vector.load %arg5[%c4, %c0_8] : memref<37x512xf32, #tpu.memory_space<vmem>>, vector<4x512xf32>
    tpu.vector_store %arg5[%c4, %c0_8], %13 {strides = array<i32>} : memref<37x512xf32, #tpu.memory_space<vmem>>, vector<4x512xf32>,
    %c15_i32 = arith.constant 15 : i32
    %15 = tpu.dynamic_rotate %0 by %c15_i32 dim 1 : vector<4x512xf32>, i32 -> vector<4x512xf32>
    %16 = vector.extract_strided_slice %2 {offsets = [2, 0], sizes = [1, 512], strides = [1, 1]} : vector<9x512xf32> to vector<1x512xf32>
    %17 = vector.broadcast %16 : vector<1x512xf32> to vector<4x512xf32>
    %18 = arith.mulf %15, %17 : vector<4x512xf32>
    %c8 = arith.constant 8 : index
    %c0_9 = arith.constant 0 : index
    %19 = vector.load %arg5[%c8, %c0_9] : memref<37x512xf32, #tpu.memory_space<vmem>>, vector<4x512xf32>
    tpu.vector_store %arg5[%c8, %c0_9], %18 {strides = array<i32>} : memref<37x512xf32, #tpu.memory_space<vmem>>, vector<4x512xf32>,
    %c1_i32 = arith.constant 1 : i32
    %20 = tpu.dynamic_rotate %0 by %c1_i32 dim 1 : vector<4x512xf32>, i32 -> vector<4x512xf32>
    %21 = vector.extract_strided_slice %2 {offsets = [3, 0], sizes = [1, 512], strides = [1, 1]} : vector<9x512xf32> to vector<1x512xf32>
    %22 = vector.broadcast %21 : vector<1x512xf32> to vector<4x512xf32>
    %23 = arith.mulf %20, %22 : vector<4x512xf32>
    %c12 = arith.constant 12 : index
    %c0_10 = arith.constant 0 : index
    %24 = vector.load %arg5[%c12, %c0_10] : memref<37x512xf32, #tpu.memory_space<vmem>>, vector<4x512xf32>
    tpu.vector_store %arg5[%c12, %c0_10], %23 {strides = array<i32>} : memref<37x512xf32, #tpu.memory_space<vmem>>, vector<4x512xf32>,
    %25 = vector.extract_strided_slice %2 {offsets = [4, 0], sizes = [1, 512], strides = [1, 1]} : vector<9x512xf32> to vector<1x512xf32>
    %26 = vector.broadcast %25 : vector<1x512xf32> to vector<4x512xf32>
    %27 = arith.mulf %0, %26 : vector<4x512xf32>
    %c16 = arith.constant 16 : index
    %c0_11 = arith.constant 0 : index
    %28 = vector.load %arg5[%c16, %c0_11] : memref<37x512xf32, #tpu.memory_space<vmem>>, vector<4x512xf32>
    tpu.vector_store %arg5[%c16, %c0_11], %27 {strides = array<i32>} : memref<37x512xf32, #tpu.memory_space<vmem>>, vector<4x512xf32>,
    %c511_i32 = arith.constant 511 : i32
    %29 = tpu.dynamic_rotate %0 by %c511_i32 dim 1 : vector<4x512xf32>, i32 -> vector<4x512xf32>
    %30 = vector.extract_strided_slice %2 {offsets = [5, 0], sizes = [1, 512], strides = [1, 1]} : vector<9x512xf32> to vector<1x512xf32>
    %31 = vector.broadcast %30 : vector<1x512xf32> to vector<4x512xf32>
    %32 = arith.mulf %29, %31 : vector<4x512xf32>
    %c20 = arith.constant 20 : index
    %c0_12 = arith.constant 0 : index
    %33 = vector.load %arg5[%c20, %c0_12] : memref<37x512xf32, #tpu.memory_space<vmem>>, vector<4x512xf32>
    tpu.vector_store %arg5[%c20, %c0_12], %32 {strides = array<i32>} : memref<37x512xf32, #tpu.memory_space<vmem>>, vector<4x512xf32>,
    %c497_i32 = arith.constant 497 : i32
    %34 = tpu.dynamic_rotate %0 by %c497_i32 dim 1 : vector<4x512xf32>, i32 -> vector<4x512xf32>
    %35 = vector.extract_strided_slice %2 {offsets = [6, 0], sizes = [1, 512], strides = [1, 1]} : vector<9x512xf32> to vector<1x512xf32>
    %36 = vector.broadcast %35 : vector<1x512xf32> to vector<4x512xf32>
    %37 = arith.mulf %34, %36 : vector<4x512xf32>
    %c24 = arith.constant 24 : index
    %c0_13 = arith.constant 0 : index
    %38 = vector.load %arg5[%c24, %c0_13] : memref<37x512xf32, #tpu.memory_space<vmem>>, vector<4x512xf32>
    tpu.vector_store %arg5[%c24, %c0_13], %37 {strides = array<i32>} : memref<37x512xf32, #tpu.memory_space<vmem>>, vector<4x512xf32>,
    %c496_i32 = arith.constant 496 : i32
    %39 = tpu.dynamic_rotate %0 by %c496_i32 dim 1 : vector<4x512xf32>, i32 -> vector<4x512xf32>
    %40 = vector.extract_strided_slice %2 {offsets = [7, 0], sizes = [1, 512], strides = [1, 1]} : vector<9x512xf32> to vector<1x512xf32>
    %41 = vector.broadcast %40 : vector<1x512xf32> to vector<4x512xf32>
    %42 = arith.mulf %39, %41 : vector<4x512xf32>
    %c28 = arith.constant 28 : index
    %c0_14 = arith.constant 0 : index
    %43 = vector.load %arg5[%c28, %c0_14] : memref<37x512xf32, #tpu.memory_space<vmem>>, vector<4x512xf32>
    tpu.vector_store %arg5[%c28, %c0_14], %42 {strides = array<i32>} : memref<37x512xf32, #tpu.memory_space<vmem>>, vector<4x512xf32>,
    %c495_i32 = arith.constant 495 : i32
    %44 = tpu.dynamic_rotate %0 by %c495_i32 dim 1 : vector<4x512xf32>, i32 -> vector<4x512xf32>
    %45 = vector.extract_strided_slice %2 {offsets = [8, 0], sizes = [1, 512], strides = [1, 1]} : vector<9x512xf32> to vector<1x512xf32>
    %46 = vector.broadcast %45 : vector<1x512xf32> to vector<4x512xf32>
    %47 = arith.mulf %44, %46 : vector<4x512xf32>
    %c32 = arith.constant 32 : index
    %c0_15 = arith.constant 0 : index
    %48 = vector.load %arg5[%c32, %c0_15] : memref<37x512xf32, #tpu.memory_space<vmem>>, vector<4x512xf32>
    tpu.vector_store %arg5[%c32, %c0_15], %47 {strides = array<i32>} : memref<37x512xf32, #tpu.memory_space<vmem>>, vector<4x512xf32>,
    %c0_16 = arith.constant 0 : index
    %c0_17 = arith.constant 0 : index
    %49 = vector.load %arg5[%c0_16, %c0_17] : memref<37x512xf32, #tpu.memory_space<vmem>>, vector<37x512xf32>
    %cst_18 = arith.constant dense<0.000000e+00> : vector<4x512xf32>
    %50 = tpu.matmul %1, %49, %cst_18 {dimension_numbers = #tpu.dot_dimension_numbers<[1], [0], [0], [1], [0, 0, 1, 1], [], []>} : vector<4x37xf32>, vector<37x512xf32>, vector<4x512xf32> -> vector<4x512xf32>
    %cst_19 = arith.constant 0.000000e+00 : f32
    %51 = vector.broadcast %cst_19 : f32 to vector<4x512xf32>
    %52 = arith.maximumf %50, %51 : vector<4x512xf32>
    %c17_i32_20 = arith.constant 17 : i32
    %53 = tpu.dynamic_rotate %52 by %c17_i32_20 dim 1 : vector<4x512xf32>, i32 -> vector<4x512xf32>
    %54 = vector.extract_strided_slice %2 {offsets = [0, 0], sizes = [1, 512], strides = [1, 1]} : vector<9x512xf32> to vector<1x512xf32>
    %55 = vector.broadcast %54 : vector<1x512xf32> to vector<4x512xf32>
    %56 = arith.mulf %53, %55 : vector<4x512xf32>
    %c0_21 = arith.constant 0 : index
    %c0_22 = arith.constant 0 : index
    %57 = vector.load %arg5[%c0_21, %c0_22] : memref<37x512xf32, #tpu.memory_space<vmem>>, vector<4x512xf32>
    tpu.vector_store %arg5[%c0_21, %c0_22], %56 {strides = array<i32>} : memref<37x512xf32, #tpu.memory_space<vmem>>, vector<4x512xf32>,
    %c16_i32_23 = arith.constant 16 : i32
    %58 = tpu.dynamic_rotate %52 by %c16_i32_23 dim 1 : vector<4x512xf32>, i32 -> vector<4x512xf32>
    %59 = vector.extract_strided_slice %2 {offsets = [1, 0], sizes = [1, 512], strides = [1, 1]} : vector<9x512xf32> to vector<1x512xf32>
    %60 = vector.broadcast %59 : vector<1x512xf32> to vector<4x512xf32>
    %61 = arith.mulf %58, %60 : vector<4x512xf32>
    %c4_24 = arith.constant 4 : index
    %c0_25 = arith.constant 0 : index
    %62 = vector.load %arg5[%c4_24, %c0_25] : memref<37x512xf32, #tpu.memory_space<vmem>>, vector<4x512xf32>
    tpu.vector_store %arg5[%c4_24, %c0_25], %61 {strides = array<i32>} : memref<37x512xf32, #tpu.memory_space<vmem>>, vector<4x512xf32>,
    %c15_i32_26 = arith.constant 15 : i32
    %63 = tpu.dynamic_rotate %52 by %c15_i32_26 dim 1 : vector<4x512xf32>, i32 -> vector<4x512xf32>
    %64 = vector.extract_strided_slice %2 {offsets = [2, 0], sizes = [1, 512], strides = [1, 1]} : vector<9x512xf32> to vector<1x512xf32>
    %65 = vector.broadcast %64 : vector<1x512xf32> to vector<4x512xf32>
    %66 = arith.mulf %63, %65 : vector<4x512xf32>
    %c8_27 = arith.constant 8 : index
    %c0_28 = arith.constant 0 : index
    %67 = vector.load %arg5[%c8_27, %c0_28] : memref<37x512xf32, #tpu.memory_space<vmem>>, vector<4x512xf32>
    tpu.vector_store %arg5[%c8_27, %c0_28], %66 {strides = array<i32>} : memref<37x512xf32, #tpu.memory_space<vmem>>, vector<4x512xf32>,
    %c1_i32_29 = arith.constant 1 : i32
    %68 = tpu.dynamic_rotate %52 by %c1_i32_29 dim 1 : vector<4x512xf32>, i32 -> vector<4x512xf32>
    %69 = vector.extract_strided_slice %2 {offsets = [3, 0], sizes = [1, 512], strides = [1, 1]} : vector<9x512xf32> to vector<1x512xf32>
    %70 = vector.broadcast %69 : vector<1x512xf32> to vector<4x512xf32>
    %71 = arith.mulf %68, %70 : vector<4x512xf32>
    %c12_30 = arith.constant 12 : index
    %c0_31 = arith.constant 0 : index
    %72 = vector.load %arg5[%c12_30, %c0_31] : memref<37x512xf32, #tpu.memory_space<vmem>>, vector<4x512xf32>
    tpu.vector_store %arg5[%c12_30, %c0_31], %71 {strides = array<i32>} : memref<37x512xf32, #tpu.memory_space<vmem>>, vector<4x512xf32>,
    %73 = vector.extract_strided_slice %2 {offsets = [4, 0], sizes = [1, 512], strides = [1, 1]} : vector<9x512xf32> to vector<1x512xf32>
    %74 = vector.broadcast %73 : vector<1x512xf32> to vector<4x512xf32>
    %75 = arith.mulf %52, %74 : vector<4x512xf32>
    %c16_32 = arith.constant 16 : index
    %c0_33 = arith.constant 0 : index
    %76 = vector.load %arg5[%c16_32, %c0_33] : memref<37x512xf32, #tpu.memory_space<vmem>>, vector<4x512xf32>
    tpu.vector_store %arg5[%c16_32, %c0_33], %75 {strides = array<i32>} : memref<37x512xf32, #tpu.memory_space<vmem>>, vector<4x512xf32>,
    %c511_i32_34 = arith.constant 511 : i32
    %77 = tpu.dynamic_rotate %52 by %c511_i32_34 dim 1 : vector<4x512xf32>, i32 -> vector<4x512xf32>
    %78 = vector.extract_strided_slice %2 {offsets = [5, 0], sizes = [1, 512], strides = [1, 1]} : vector<9x512xf32> to vector<1x512xf32>
    %79 = vector.broadcast %78 : vector<1x512xf32> to vector<4x512xf32>
    %80 = arith.mulf %77, %79 : vector<4x512xf32>
    %c20_35 = arith.constant 20 : index
    %c0_36 = arith.constant 0 : index
    %81 = vector.load %arg5[%c20_35, %c0_36] : memref<37x512xf32, #tpu.memory_space<vmem>>, vector<4x512xf32>
    tpu.vector_store %arg5[%c20_35, %c0_36], %80 {strides = array<i32>} : memref<37x512xf32, #tpu.memory_space<vmem>>, vector<4x512xf32>,
    %c497_i32_37 = arith.constant 497 : i32
    %82 = tpu.dynamic_rotate %52 by %c497_i32_37 dim 1 : vector<4x512xf32>, i32 -> vector<4x512xf32>
    %83 = vector.extract_strided_slice %2 {offsets = [6, 0], sizes = [1, 512], strides = [1, 1]} : vector<9x512xf32> to vector<1x512xf32>
    %84 = vector.broadcast %83 : vector<1x512xf32> to vector<4x512xf32>
    %85 = arith.mulf %82, %84 : vector<4x512xf32>
    %c24_38 = arith.constant 24 : index
    %c0_39 = arith.constant 0 : index
    %86 = vector.load %arg5[%c24_38, %c0_39] : memref<37x512xf32, #tpu.memory_space<vmem>>, vector<4x512xf32>
    tpu.vector_store %arg5[%c24_38, %c0_39], %85 {strides = array<i32>} : memref<37x512xf32, #tpu.memory_space<vmem>>, vector<4x512xf32>,
    %c496_i32_40 = arith.constant 496 : i32
    %87 = tpu.dynamic_rotate %52 by %c496_i32_40 dim 1 : vector<4x512xf32>, i32 -> vector<4x512xf32>
    %88 = vector.extract_strided_slice %2 {offsets = [7, 0], sizes = [1, 512], strides = [1, 1]} : vector<9x512xf32> to vector<1x512xf32>
    %89 = vector.broadcast %88 : vector<1x512xf32> to vector<4x512xf32>
    %90 = arith.mulf %87, %89 : vector<4x512xf32>
    %c28_41 = arith.constant 28 : index
    %c0_42 = arith.constant 0 : index
    %91 = vector.load %arg5[%c28_41, %c0_42] : memref<37x512xf32, #tpu.memory_space<vmem>>, vector<4x512xf32>
    tpu.vector_store %arg5[%c28_41, %c0_42], %90 {strides = array<i32>} : memref<37x512xf32, #tpu.memory_space<vmem>>, vector<4x512xf32>,
    %c495_i32_43 = arith.constant 495 : i32
    %92 = tpu.dynamic_rotate %52 by %c495_i32_43 dim 1 : vector<4x512xf32>, i32 -> vector<4x512xf32>
    %93 = vector.extract_strided_slice %2 {offsets = [8, 0], sizes = [1, 512], strides = [1, 1]} : vector<9x512xf32> to vector<1x512xf32>
    %94 = vector.broadcast %93 : vector<1x512xf32> to vector<4x512xf32>
    %95 = arith.mulf %92, %94 : vector<4x512xf32>
    %c32_44 = arith.constant 32 : index
    %c0_45 = arith.constant 0 : index
    %96 = vector.load %arg5[%c32_44, %c0_45] : memref<37x512xf32, #tpu.memory_space<vmem>>, vector<4x512xf32>
    tpu.vector_store %arg5[%c32_44, %c0_45], %95 {strides = array<i32>} : memref<37x512xf32, #tpu.memory_space<vmem>>, vector<4x512xf32>,
    %c0_46 = arith.constant 0 : index
    %c0_47 = arith.constant 0 : index
    %97 = vector.load %arg5[%c0_46, %c0_47] : memref<37x512xf32, #tpu.memory_space<vmem>>, vector<37x512xf32>
    %cst_48 = arith.constant dense<0.000000e+00> : vector<4x512xf32>
    %98 = tpu.matmul %1, %97, %cst_48 {dimension_numbers = #tpu.dot_dimension_numbers<[1], [0], [0], [1], [0, 0, 1, 1], [], []>} : vector<4x37xf32>, vector<37x512xf32>, vector<4x512xf32> -> vector<4x512xf32>
    %99 = arith.addf %0, %98 : vector<4x512xf32>
    %c0_49 = arith.constant 0 : index
    %c0_50 = arith.constant 0 : index
    %100 = vector.load %arg4[%c0_49, %c0_50] : memref<4x512xf32, #tpu.memory_space<vmem>>, vector<4x512xf32>
    tpu.vector_store %arg4[%c0_49, %c0_50], %99 {strides = array<i32>} : memref<4x512xf32, #tpu.memory_space<vmem>>, vector<4x512xf32>,
    return
  }
  func.func @transform_0(%arg0: i32) -> (i32, i32) {
    %c0_i32 = arith.constant 0 : i32
    %c0_i32_0 = arith.constant 0 : i32
    return %c0_i32, %arg0 : i32, i32
  }
  func.func @transform_1(%arg0: i32) -> (i32, i32) {
    %c0_i32 = arith.constant 0 : i32
    %c0_i32_0 = arith.constant 0 : i32
    %c0_i32_1 = arith.constant 0 : i32
    return %c0_i32, %c0_i32_0 : i32, i32
  }
  func.func @transform_2(%arg0: i32) -> (i32, i32) {
    %c0_i32 = arith.constant 0 : i32
    %c0_i32_0 = arith.constant 0 : i32
    %c0_i32_1 = arith.constant 0 : i32
    return %c0_i32, %c0_i32_0 : i32, i32
  }
  func.func @transform_3(%arg0: i32) -> (i32, i32) {
    %c0_i32 = arith.constant 0 : i32
    %c0_i32_0 = arith.constant 0 : i32
    return %c0_i32, %arg0 : i32, i32
  }
}

</mosaic_0001>

<llo_original>
// kernel: resnet_layer_forward.1
$region0: #{resnet_layer_forward.1}
  #allocation0 [shape = 'u32[]', space=smem, size = 0x4, offset = 0x4, fixed_abs, tag = 'smem constant byte address 0x4 - core index']
  #allocation1 [shape = 'u32[144,128]{1,0:T(1,128)}', space=vmem, size = 0x12000, scoped, tag = 'internal scratch']
  #allocation2 [shape = 'f32[37,512]{1,0:T(8,128)}', space=vmem, size = 0x14000, scoped, tag = 'scratch operand']
  %s0 = inlined_call_operand.vmem [shape: f32[4,512], index: 0, kind: input, shape index: {}]
  %s1 = inlined_call_operand.vmem [shape: f32[4,37], index: 1, kind: input, shape index: {}]
  %s2 = inlined_call_operand.vmem [shape: f32[9,512], index: 2, kind: input, shape index: {}]
  %s3 = inlined_call_operand.vmem [shape: f32[4,512], index: 3, kind: output, shape index: {}]
  %s4 = sld [smem:[#allocation0]]
  $region22: #{resnet_layer_forward.1} parent=0
    _
  %s6 = ssub.s32 1, %s4
  %s7 = scalar_select 0, %s6, %s4
  // Predicated region
  $region2: #{resnet_layer_forward.1} parent=0 // pred_check
    _
  $region3: #{resnet_layer_forward.1} parent=0 // pred_check_branch
    %9 = sbr.rel (0) target = $region5
  $region4: #{resnet_layer_forward.1} parent=0 // pred_region
    _
  $region5: #{resnet_layer_forward.1} parent=0 // pred_fallthru
    _
  // Predicated region
  $region6: #{resnet_layer_forward.1} parent=0 // pred_check
    _
  $region7: #{resnet_layer_forward.1} parent=0 // pred_check_branch
    %11 = sbr.rel (0) target = $region9
  $region8: #{resnet_layer_forward.1} parent=0 // pred_region
    _
  $region9: #{resnet_layer_forward.1} parent=0 // pred_fallthru
    _
  // Predicated region
  $region10: #{resnet_layer_forward.1} parent=0 // pred_check
    _
  $region11: #{resnet_layer_forward.1} parent=0 // pred_check_branch
    %13 = sbr.rel (0) target = $region13
  $region12: #{resnet_layer_forward.1} parent=0 // pred_region
    _
  $region13: #{resnet_layer_forward.1} parent=0 // pred_fallthru
    _
  %v14 = vld [vmem:[%s0] sm:$0xff]
  %v15 = vld [vmem:[%s0 + $0x8] sm:$0xff]
  %v16 = vld [vmem:[%s1] sm:$0xf]
  %v17 = vld [vmem:[%s2] sm:$0xff]
  %v18 = vld [vmem:[%s2 + $0x8] sm:$0xff]
  %v19 = vld [vmem:[%s2 + $0x10] sm:$0xff]
  %v20 = vld [vmem:[%s2 + $0x18] sm:$0xff]
  %v21 = vld [vmem:[%s2 + $0x20] sm:$0x1]
  %v22 = vld [vmem:[%s2 + $0x28] sm:$0x1]
  %v23 = vld [vmem:[%s2 + $0x30] sm:$0x1]
  %v24 = vld [vmem:[%s2 + $0x38] sm:$0x1]
  %v25 = vlaneseq
  %vm26 = vcmp.ge.s32.totalorder %v25, 0
  %vm27 = vcmp.lt.s32.totalorder %v25, 512
  %vm28 = vmand %vm26, %vm27
  %s29 = scalar_lea.vmem [#allocation2], 132
  %30 = vst.msk [vmem:[%s29] ss:$8 sm:$0xf] %vm28, 1.0
  %31 = vst.msk [vmem:[%s29] ss:$8 sm:$0x0] %vm28, 1.0
  %v34 = vcombine.high %v14, %v14
  %v35 = vcombine.high %v15, %v15
  %38 = vrot.lane.b32.xlu0 %v14, 17
  %v39 = vpop.permute.xlu0 %38
  %40 = vrot.lane.b32.xlu0 %v34, 17
  %v41 = vpop.permute.xlu0 %40
  %42 = vrot.lane.b32.xlu0 %v15, 17
  %v43 = vpop.permute.xlu0 %42
  %44 = vrot.lane.b32.xlu0 %v35, 17
  %v45 = vpop.permute.xlu0 %44
  %v46 = vlaneseq
  %v47 = vand.u32 %v46, 127
  %vm48 = vcmp.lt.s32.totalorder %v47, 17
  %v49 = vsel %vm48, %v43, %v45
  %v50 = vsel %vm48, %v41, %v43
  %v51 = vsel %vm48, %v39, %v41
  %v52 = vsel %vm48, %v45, %v39
  %v53 = vlaneseq
  %v54 = vshrl.u32 %v53, 7
  %v55 = vsub.s32 0, %v54
  %v56 = vrot.slane %v17, %v55
  %v57 = vlaneseq
  %v58 = vshrl.u32 %v57, 7
  %v59 = vsub.s32 0, %v58
  %v60 = vrot.slane %v18, %v59
  %v61 = vlaneseq
  %v62 = vshrl.u32 %v61, 7
  %v63 = vsub.s32 0, %v62
  %v64 = vrot.slane %v19, %v63
  %v65 = vlaneseq
  %v66 = vshrl.u32 %v65, 7
  %v67 = vsub.s32 0, %v66
  %v68 = vrot.slane %v20, %v67
  %v69 = vmul.f32 %v52, %v56
  %v70 = vmul.f32 %v51, %v60
  %v71 = vmul.f32 %v50, %v64
  %v72 = vmul.f32 %v49, %v68
  %73 = vst [vmem:[#allocation2] sm:$0xf] %v69
  %74 = vst [vmem:[#allocation2 + $0x8] sm:$0xf] %v70
  %75 = vst [vmem:[#allocation2 + $0x10] sm:$0xf] %v71
  %76 = vst [vmem:[#allocation2 + $0x18] sm:$0xf] %v72
  %77 = vrot.lane.b32.xlu0 %v14, 16
  %v78 = vpop.permute.xlu0 %77
  %79 = vrot.lane.b32.xlu0 %v34, 16
  %v80 = vpop.permute.xlu0 %79
  %81 = vrot.lane.b32.xlu0 %v15, 16
  %v82 = vpop.permute.xlu0 %81
  %83 = vrot.lane.b32.xlu0 %v35, 16
  %v84 = vpop.permute.xlu0 %83
  %vm85 = vcmp.lt.s32.totalorder %v47, 16
  %v86 = vsel %vm85, %v82, %v84
  %v87 = vsel %vm85, %v80, %v82
  %v88 = vsel %vm85, %v78, %v80
  %v89 = vsel %vm85, %v84, %v78
  %v90 = vlaneseq
  %v91 = vshrl.u32 %v90, 7
  %v92 = vsub.s32 1, %v91
  %v93 = vrot.slane %v17, %v92
  %v94 = vlaneseq
  %v95 = vshrl.u32 %v94, 7
  %v96 = vsub.s32 1, %v95
  %v97 = vrot.slane %v18, %v96
  %v98 = vlaneseq
  %v99 = vshrl.u32 %v98, 7
  %v100 = vsub.s32 1, %v99
  %v101 = vrot.slane %v19, %v100
  %v102 = vlaneseq
  %v103 = vshrl.u32 %v102, 7
  %v104 = vsub.s32 1, %v103
  %v105 = vrot.slane %v20, %v104
  %v106 = vmul.f32 %v89, %v93
  %v107 = vmul.f32 %v88, %v97
  %v108 = vmul.f32 %v87, %v101
  %v109 = vmul.f32 %v86, %v105
  %v114 = vrot.slane %v106, 4
  %v115 = vrot.slane %v107, 4
  %v116 = vrot.slane %v108, 4
  %v117 = vrot.slane %v109, 4
  %122 = vst [vmem:[#allocation2] sm:$0xf0] %v114
  %123 = vst [vmem:[#allocation2 + $0x8] sm:$0xf0] %v115
  %124 = vst [vmem:[#allocation2 + $0x10] sm:$0xf0] %v116
  %125 = vst [vmem:[#allocation2 + $0x18] sm:$0xf0] %v117
  %126 = vrot.lane.b32.xlu0 %v14, 15
  %v127 = vpop.permute.xlu0 %126
  %128 = vrot.lane.b32.xlu0 %v34, 15
  %v129 = vpop.permute.xlu0 %128
  %130 = vrot.lane.b32.xlu0 %v15, 15
  %v131 = vpop.permute.xlu0 %130
  %132 = vrot.lane.b32.xlu0 %v35, 15
  %v133 = vpop.permute.xlu0 %132
  %vm134 = vcmp.lt.s32.totalorder %v47, 15
  %v135 = vsel %vm134, %v131, %v133
  %v136 = vsel %vm134, %v129, %v131
  %v137 = vsel %vm134, %v127, %v129
  %v138 = vsel %vm134, %v133, %v127
  %v139 = vlaneseq
  %v140 = vshrl.u32 %v139, 7
  %v141 = vsub.s32 2, %v140
  %v142 = vrot.slane %v17, %v141
  %v143 = vlaneseq
  %v144 = vshrl.u32 %v143, 7
  %v145 = vsub.s32 2, %v144
  %v146 = vrot.slane %v18, %v145
  %v147 = vlaneseq
  %v148 = vshrl.u32 %v147, 7
  %v149 = vsub.s32 2, %v148
  %v150 = vrot.slane %v19, %v149
  %v151 = vlaneseq
  %v152 = vshrl.u32 %v151, 7
  %v153 = vsub.s32 2, %v152
  %v154 = vrot.slane %v20, %v153
  %v155 = vmul.f32 %v138, %v142
  %v156 = vmul.f32 %v137, %v146
  %v157 = vmul.f32 %v136, %v150
  %v158 = vmul.f32 %v135, %v154
  %159 = vst [vmem:[#allocation2 + $0x20] sm:$0xf] %v155
  %160 = vst [vmem:[#allocation2 + $0x28] sm:$0xf] %v156
  %161 = vst [vmem:[#allocation2 + $0x30] sm:$0xf] %v157
  %162 = vst [vmem:[#allocation2 + $0x38] sm:$0xf] %v158
  %163 = vrot.lane.b32.xlu0 %v14, 1
  %v164 = vpop.permute.xlu0 %163
  %165 = vrot.lane.b32.xlu0 %v34, 1
  %v166 = vpop.permute.xlu0 %165
  %167 = vrot.lane.b32.xlu0 %v15, 1
  %v168 = vpop.permute.xlu0 %167
  %169 = vrot.lane.b32.xlu0 %v35, 1
  %v170 = vpop.permute.xlu0 %169
  %vm171 = vcmp.lt.s32.totalorder %v47, 1
  %v172 = vsel %vm171, %v168, %v170
  %v173 = vsel %vm171, %v166, %v168
  %v174 = vsel %vm171, %v164, %v166
  %v175 = vsel %vm171, %v170, %v164
  %v176 = vlaneseq
  %v177 = vshrl.u32 %v176, 7
  %v178 = vsub.s32 3, %v177
  %v179 = vrot.slane %v17, %v178
  %v180 = vlaneseq
  %v181 = vshrl.u32 %v180, 7
  %v182 = vsub.s32 3, %v181
  %v183 = vrot.slane %v18, %v182
  %v184 = vlaneseq
  %v185 = vshrl.u32 %v184, 7
  %v186 = vsub.s32 3, %v185
  %v187 = vrot.slane %v19, %v186
  %v188 = vlaneseq
  %v189 = vshrl.u32 %v188, 7
  %v190 = vsub.s32 3, %v189
  %v191 = vrot.slane %v20, %v190
  %v192 = vmul.f32 %v175, %v179
  %v193 = vmul.f32 %v174, %v183
  %v194 = vmul.f32 %v173, %v187
  %v195 = vmul.f32 %v172, %v191
  %v200 = vrot.slane %v192, 4
  %v201 = vrot.slane %v193, 4
  %v202 = vrot.slane %v194, 4
  %v203 = vrot.slane %v195, 4
  %208 = vst [vmem:[#allocation2 + $0x20] sm:$0xf0] %v200
  %209 = vst [vmem:[#allocation2 + $0x28] sm:$0xf0] %v201
  %210 = vst [vmem:[#allocation2 + $0x30] sm:$0xf0] %v202
  %211 = vst [vmem:[#allocation2 + $0x38] sm:$0xf0] %v203
  %v212 = vlaneseq
  %v213 = vshrl.u32 %v212, 7
  %v214 = vsub.s32 4, %v213
  %v215 = vrot.slane %v17, %v214
  %v216 = vlaneseq
  %v217 = vshrl.u32 %v216, 7
  %v218 = vsub.s32 4, %v217
  %v219 = vrot.slane %v18, %v218
  %v220 = vlaneseq
  %v221 = vshrl.u32 %v220, 7
  %v222 = vsub.s32 4, %v221
  %v223 = vrot.slane %v19, %v222
  %v224 = vlaneseq
  %v225 = vshrl.u32 %v224, 7
  %v226 = vsub.s32 4, %v225
  %v227 = vrot.slane %v20, %v226
  %v232 = vcombine.low %v215, %v219
  %v233 = vcombine.low %v223, %v227
  %v236 = vmul.f32 %v14, %v232
  %v237 = vmul.f32 %v15, %v233
  %v240 = vcombine.high %v236, %v236
  %v241 = vcombine.high %v237, %v237
  %244 = vst [vmem:[#allocation2 + $0x40] sm:$0xf] %v236
  %245 = vst [vmem:[#allocation2 + $0x48] sm:$0xf] %v240
  %246 = vst [vmem:[#allocation2 + $0x50] sm:$0xf] %v237
  %247 = vst [vmem:[#allocation2 + $0x58] sm:$0xf] %v241
  %248 = vrot.lane.b32.xlu0 %v14, 127
  %v249 = vpop.permute.xlu0 %248
  %250 = vrot.lane.b32.xlu0 %v34, 127
  %v251 = vpop.permute.xlu0 %250
  %252 = vrot.lane.b32.xlu0 %v15, 127
  %v253 = vpop.permute.xlu0 %252
  %254 = vrot.lane.b32.xlu0 %v35, 127
  %v255 = vpop.permute.xlu0 %254
  %vm256 = vcmp.lt.s32.totalorder %v47, 127
  %v257 = vsel %vm256, %v253, %v255
  %v258 = vsel %vm256, %v251, %v253
  %v259 = vsel %vm256, %v249, %v251
  %v260 = vsel %vm256, %v255, %v249
  %v261 = vlaneseq
  %v262 = vshrl.u32 %v261, 7
  %v263 = vsub.s32 5, %v262
  %v264 = vrot.slane %v17, %v263
  %v265 = vlaneseq
  %v266 = vshrl.u32 %v265, 7
  %v267 = vsub.s32 5, %v266
  %v268 = vrot.slane %v18, %v267
  %v269 = vlaneseq
  %v270 = vshrl.u32 %v269, 7
  %v271 = vsub.s32 5, %v270
  %v272 = vrot.slane %v19, %v271
  %v273 = vlaneseq
  %v274 = vshrl.u32 %v273, 7
  %v275 = vsub.s32 5, %v274
  %v276 = vrot.slane %v20, %v275
  %v277 = vmul.f32 %v259, %v264
  %v278 = vmul.f32 %v258, %v268
  %v279 = vmul.f32 %v257, %v272
  %v280 = vmul.f32 %v260, %v276
  %v285 = vrot.slane %v277, 4
  %v286 = vrot.slane %v278, 4
  %v287 = vrot.slane %v279, 4
  %v288 = vrot.slane %v280, 4
  %293 = vst [vmem:[#allocation2 + $0x40] sm:$0xf0] %v285
  %294 = vst [vmem:[#allocation2 + $0x48] sm:$0xf0] %v286
  %295 = vst [vmem:[#allocation2 + $0x50] sm:$0xf0] %v287
  %296 = vst [vmem:[#allocation2 + $0x58] sm:$0xf0] %v288
  %297 = vrot.lane.b32.xlu0 %v14, 113
  %v298 = vpop.permute.xlu0 %297
  %299 = vrot.lane.b32.xlu0 %v34, 113
  %v300 = vpop.permute.xlu0 %299
  %301 = vrot.lane.b32.xlu0 %v15, 113
  %v302 = vpop.permute.xlu0 %301
  %303 = vrot.lane.b32.xlu0 %v35, 113
  %v304 = vpop.permute.xlu0 %303
  %vm305 = vcmp.lt.s32.totalorder %v47, 113
  %v306 = vsel %vm305, %v302, %v304
  %v307 = vsel %vm305, %v300, %v302
  %v308 = vsel %vm305, %v298, %v300
  %v309 = vsel %vm305, %v304, %v298
  %v310 = vlaneseq
  %v311 = vshrl.u32 %v310, 7
  %v312 = vsub.s32 6, %v311
  %v313 = vrot.slane %v17, %v312
  %v314 = vlaneseq
  %v315 = vshrl.u32 %v314, 7
  %v316 = vsub.s32 6, %v315
  %v317 = vrot.slane %v18, %v316
  %v318 = vlaneseq
  %v319 = vshrl.u32 %v318, 7
  %v320 = vsub.s32 6, %v319
  %v321 = vrot.slane %v19, %v320
  %v322 = vlaneseq
  %v323 = vshrl.u32 %v322, 7
  %v324 = vsub.s32 6, %v323
  %v325 = vrot.slane %v20, %v324
  %v326 = vmul.f32 %v308, %v313
  %v327 = vmul.f32 %v307, %v317
  %v328 = vmul.f32 %v306, %v321
  %v329 = vmul.f32 %v309, %v325
  %330 = vst [vmem:[#allocation2 + $0x60] sm:$0xf] %v326
  %331 = vst [vmem:[#allocation2 + $0x68] sm:$0xf] %v327
  %332 = vst [vmem:[#allocation2 + $0x70] sm:$0xf] %v328
  %333 = vst [vmem:[#allocation2 + $0x78] sm:$0xf] %v329
  %334 = vrot.lane.b32.xlu0 %v14, 112
  %v335 = vpop.permute.xlu0 %334
  %336 = vrot.lane.b32.xlu0 %v34, 112
  %v337 = vpop.permute.xlu0 %336
  %338 = vrot.lane.b32.xlu0 %v15, 112
  %v339 = vpop.permute.xlu0 %338
  %340 = vrot.lane.b32.xlu0 %v35, 112
  %v341 = vpop.permute.xlu0 %340
  %vm342 = vcmp.lt.s32.totalorder %v47, 112
  %v343 = vsel %vm342, %v339, %v341
  %v344 = vsel %vm342, %v337, %v339
  %v345 = vsel %vm342, %v335, %v337
  %v346 = vsel %vm342, %v341, %v335
  %v347 = vlaneseq
  %v348 = vshrl.u32 %v347, 7
  %v349 = vsub.s32 7, %v348
  %v350 = vrot.slane %v17, %v349
  %v351 = vlaneseq
  %v352 = vshrl.u32 %v351, 7
  %v353 = vsub.s32 7, %v352
  %v354 = vrot.slane %v18, %v353
  %v355 = vlaneseq
  %v356 = vshrl.u32 %v355, 7
  %v357 = vsub.s32 7, %v356
  %v358 = vrot.slane %v19, %v357
  %v359 = vlaneseq
  %v360 = vshrl.u32 %v359, 7
  %v361 = vsub.s32 7, %v360
  %v362 = vrot.slane %v20, %v361
  %v363 = vmul.f32 %v345, %v350
  %v364 = vmul.f32 %v344, %v354
  %v365 = vmul.f32 %v343, %v358
  %v366 = vmul.f32 %v346, %v362
  %v371 = vrot.slane %v363, 4
  %v372 = vrot.slane %v364, 4
  %v373 = vrot.slane %v365, 4
  %v374 = vrot.slane %v366, 4
  %379 = vst [vmem:[#allocation2 + $0x60] sm:$0xf0] %v371
  %380 = vst [vmem:[#allocation2 + $0x68] sm:$0xf0] %v372
  %381 = vst [vmem:[#allocation2 + $0x70] sm:$0xf0] %v373
  %382 = vst [vmem:[#allocation2 + $0x78] sm:$0xf0] %v374
  %383 = vrot.lane.b32.xlu0 %v14, 111
  %v384 = vpop.permute.xlu0 %383
  %385 = vrot.lane.b32.xlu0 %v34, 111
  %v386 = vpop.permute.xlu0 %385
  %387 = vrot.lane.b32.xlu0 %v15, 111
  %v388 = vpop.permute.xlu0 %387
  %389 = vrot.lane.b32.xlu0 %v35, 111
  %v390 = vpop.permute.xlu0 %389
  %vm391 = vcmp.lt.s32.totalorder %v47, 111
  %v392 = vsel %vm391, %v388, %v390
  %v393 = vsel %vm391, %v386, %v388
  %v394 = vsel %vm391, %v384, %v386
  %v395 = vsel %vm391, %v390, %v384
  %v396 = vlaneseq
  %v397 = vshrl.u32 %v396, 7
  %v398 = vsub.s32 0, %v397
  %v399 = vrot.slane %v21, %v398
  %v400 = vlaneseq
  %v401 = vshrl.u32 %v400, 7
  %v402 = vsub.s32 0, %v401
  %v403 = vrot.slane %v22, %v402
  %v404 = vlaneseq
  %v405 = vshrl.u32 %v404, 7
  %v406 = vsub.s32 0, %v405
  %v407 = vrot.slane %v23, %v406
  %v408 = vlaneseq
  %v409 = vshrl.u32 %v408, 7
  %v410 = vsub.s32 0, %v409
  %v411 = vrot.slane %v24, %v410
  %v412 = vmul.f32 %v394, %v399
  %v413 = vmul.f32 %v393, %v403
  %v414 = vmul.f32 %v392, %v407
  %v415 = vmul.f32 %v395, %v411
  %416 = vst [vmem:[#allocation2 + $0x80] sm:$0xf] %v412
  %417 = vst [vmem:[#allocation2 + $0x88] sm:$0xf] %v413
  %418 = vst [vmem:[#allocation2 + $0x90] sm:$0xf] %v414
  %419 = vst [vmem:[#allocation2 + $0x98] sm:$0xf] %v415
  %v420 = vld [vmem:[#allocation2] sm:$0xff]
  %v421 = vld [vmem:[#allocation2 + $0x8] sm:$0xff]
  %v422 = vld [vmem:[#allocation2 + $0x10] sm:$0xff]
  %v423 = vld [vmem:[#allocation2 + $0x18] sm:$0xff]
  %v424 = vld [vmem:[#allocation2 + $0x20] sm:$0xff]
  %v425 = vld [vmem:[#allocation2 + $0x28] sm:$0xff]
  %v426 = vld [vmem:[#allocation2 + $0x30] sm:$0xff]
  %v427 = vld [vmem:[#allocation2 + $0x38] sm:$0xff]
  %v428 = vld [vmem:[#allocation2 + $0x40] sm:$0xff]
  %v429 = vld [vmem:[#allocation2 + $0x48] sm:$0xff]
  %v430 = vld [vmem:[#allocation2 + $0x50] sm:$0xff]
  %v431 = vld [vmem:[#allocation2 + $0x58] sm:$0xff]
  %v432 = vld [vmem:[#allocation2 + $0x60] sm:$0xff]
  %v433 = vld [vmem:[#allocation2 + $0x68] sm:$0xff]
  %v434 = vld [vmem:[#allocation2 + $0x70] sm:$0xff]
  %v435 = vld [vmem:[#allocation2 + $0x78] sm:$0xff]
  %v436 = vld [vmem:[#allocation2 + $0x80] sm:$0x1f]
  %v437 = vld [vmem:[#allocation2 + $0x88] sm:$0x1f]
  %v438 = vld [vmem:[#allocation2 + $0x90] sm:$0x1f]
  %v439 = vld [vmem:[#allocation2 + $0x98] sm:$0x1f]
  %vm440 = vcmask 302080
  %v442 = vsel %vm440, %v16, 0
  %vm444 = vcmask 1044480
  %v446 = vsel %vm444, %v436, 0
  %v449 = vsel %vm444, %v437, 0
  %v452 = vsel %vm444, %v438, 0
  %v455 = vsel %vm444, %v439, 0
  %457 = vmatprep.subr.mxu0 0.0
  %458 = vmatpush1.msra.mxu0 0.0
  %459 = vmatprep.subr.mxu0 0.0
  %460 = vmatpush1.msra.mxu0 0.0
  %461 = vmatprep.subr.mxu0 0.0
  %462 = vmatpush1.msra.mxu0 0.0
  %463 = vmatprep.subr.mxu0 0.0
  %464 = vmatpush1.msra.mxu0 0.0
  %465 = vmatprep.subr.mxu0 0.0
  %466 = vmatpush1.msra.mxu0 0.0
  %467 = vmatprep.subr.mxu0 0.0
  %468 = vmatpush1.msra.mxu0 0.0
  %469 = vmatprep.subr.mxu0 0.0
  %470 = vmatpush1.msra.mxu0 0.0
  %471 = vmatprep.subr.mxu0 0.0
  %472 = vmatpush1.msra.mxu0 0.0
  %473 = vmatprep.subr.mxu0 0.0
  %474 = vmatpush1.msra.mxu0 0.0
  %475 = vmatprep.subr.mxu0 0.0
  %476 = vmatpush1.msra.mxu0 0.0
  %477 = vmatprep.subr.mxu0 0.0
  %478 = vmatpush1.msra.mxu0 0.0
  %479 = vmatprep.subr.mxu0 %v449
  %480 = vmatpush1.msra.mxu0 %v446
  %481 = vmatprep.subr.mxu0 %v433
  %482 = vmatpush1.msra.mxu0 %v432
  %483 = vmatprep.subr.mxu0 %v429
  %484 = vmatpush1.msra.mxu0 %v428
  %485 = vmatprep.subr.mxu0 %v425
  %486 = vmatpush1.msra.mxu0 %v424
  %487 = vmatprep.subr.mxu0 %v421
  %488 = vmatpush1.msra.mxu0 %v420
  %489 = vmatprep.subr.mxu0 0.0
  %490 = vmatpush2.msra.mxu0 0.0
  %491 = vmatprep.subr.mxu0 0.0
  %492 = vmatpush2.msra.mxu0 0.0
  %493 = vmatprep.subr.mxu0 0.0
  %494 = vmatpush2.msra.mxu0 0.0
  %495 = vmatprep.subr.mxu0 0.0
  %496 = vmatpush2.msra.mxu0 0.0
  %497 = vmatprep.subr.mxu0 0.0
  %498 = vmatpush2.msra.mxu0 0.0
  %499 = vmatprep.subr.mxu0 0.0
  %500 = vmatpush2.msra.mxu0 0.0
  %501 = vmatprep.subr.mxu0 0.0
  %502 = vmatpush2.msra.mxu0 0.0
  %503 = vmatprep.subr.mxu0 0.0
  %504 = vmatpush2.msra.mxu0 0.0
  %505 = vmatprep.subr.mxu0 0.0
  %506 = vmatpush2.msra.mxu0 0.0
  %507 = vmatprep.subr.mxu0 0.0
  %508 = vmatpush2.msra.mxu0 0.0
  %509 = vmatprep.subr.mxu0 0.0
  %510 = vmatpush2.msra.mxu0 0.0
  %511 = vmatprep.subr.mxu0 0.0
  %512 = vmatpush2.msra.mxu0 0.0
  %513 = vmatprep.subr.mxu0 0.0
  %514 = vmatpush2.msra.mxu0 0.0
  %515 = vmatprep.subr.mxu0 0.0
  %516 = vmatpush2.msra.mxu0 0.0
  %517 = vmatprep.subr.mxu0 0.0
  %518 = vmatpush2.msra.mxu0 0.0
  %519 = vmatprep.subr.mxu0 0.0
  %520 = vmatpush2.msra.mxu0 0.0
  %521 = vmatprep.mubr.f32.mxu0 0.0
  %522 = vmatmul.mubr.f32.gmra.mxu0 %v442
  %v523 = vpop.f32.mrf.mxu0
  %v524 = vadd.f32 0.0, %v523
  %v525 = vpop.f32.mrf.mxu0
  %v526 = vadd.f32 0.0, %v525
  %527 = vdwg.mxu0
  %528 = vmatprep.subr.mxu0 0.0
  %529 = vmatpush1.msra.mxu0 0.0
  %530 = vmatprep.subr.mxu0 0.0
  %531 = vmatpush1.msra.mxu0 0.0
  %532 = vmatprep.subr.mxu0 0.0
  %533 = vmatpush1.msra.mxu0 0.0
  %534 = vmatprep.subr.mxu0 0.0
  %535 = vmatpush1.msra.mxu0 0.0
  %536 = vmatprep.subr.mxu0 0.0
  %537 = vmatpush1.msra.mxu0 0.0
  %538 = vmatprep.subr.mxu0 0.0
  %539 = vmatpush1.msra.mxu0 0.0
  %540 = vmatprep.subr.mxu0 0.0
  %541 = vmatpush1.msra.mxu0 0.0
  %542 = vmatprep.subr.mxu0 0.0
  %543 = vmatpush1.msra.mxu0 0.0
  %544 = vmatprep.subr.mxu0 0.0
  %545 = vmatpush1.msra.mxu0 0.0
  %546 = vmatprep.subr.mxu0 0.0
  %547 = vmatpush1.msra.mxu0 0.0
  %548 = vmatprep.subr.mxu0 0.0
  %549 = vmatpush1.msra.mxu0 0.0
  %550 = vmatprep.subr.mxu0 %v455
  %551 = vmatpush1.msra.mxu0 %v452
  %552 = vmatprep.subr.mxu0 %v435
  %553 = vmatpush1.msra.mxu0 %v434
  %554 = vmatprep.subr.mxu0 %v431
  %555 = vmatpush1.msra.mxu0 %v430
  %556 = vmatprep.subr.mxu0 %v427
  %557 = vmatpush1.msra.mxu0 %v426
  %558 = vmatprep.subr.mxu0 %v423
  %559 = vmatpush1.msra.mxu0 %v422
  %560 = vmatprep.subr.mxu0 0.0
  %561 = vmatpush2.msra.mxu0 0.0
  %562 = vmatprep.subr.mxu0 0.0
  %563 = vmatpush2.msra.mxu0 0.0
  %564 = vmatprep.subr.mxu0 0.0
  %565 = vmatpush2.msra.mxu0 0.0
  %566 = vmatprep.subr.mxu0 0.0
  %567 = vmatpush2.msra.mxu0 0.0
  %568 = vmatprep.subr.mxu0 0.0
  %569 = vmatpush2.msra.mxu0 0.0
  %570 = vmatprep.subr.mxu0 0.0
  %571 = vmatpush2.msra.mxu0 0.0
  %572 = vmatprep.subr.mxu0 0.0
  %573 = vmatpush2.msra.mxu0 0.0
  %574 = vmatprep.subr.mxu0 0.0
  %575 = vmatpush2.msra.mxu0 0.0
  %576 = vmatprep.subr.mxu0 0.0
  %577 = vmatpush2.msra.mxu0 0.0
  %578 = vmatprep.subr.mxu0 0.0
  %579 = vmatpush2.msra.mxu0 0.0
  %580 = vmatprep.subr.mxu0 0.0
  %581 = vmatpush2.msra.mxu0 0.0
  %582 = vmatprep.subr.mxu0 0.0
  %583 = vmatpush2.msra.mxu0 0.0
  %584 = vmatprep.subr.mxu0 0.0
  %585 = vmatpush2.msra.mxu0 0.0
  %586 = vmatprep.subr.mxu0 0.0
  %587 = vmatpush2.msra.mxu0 0.0
  %588 = vmatprep.subr.mxu0 0.0
  %589 = vmatpush2.msra.mxu0 0.0
  %590 = vmatprep.subr.mxu0 0.0
  %591 = vmatpush2.msra.mxu0 0.0
  %592 = vmatprep.mubr.f32.mxu0 0.0
  %593 = vmatmul.mubr.f32.gmra.mxu0 %v442
  %v594 = vpop.f32.mrf.mxu0
  %v595 = vadd.f32 0.0, %v594
  %v596 = vpop.f32.mrf.mxu0
  %v597 = vadd.f32 0.0, %v596
  %598 = vdwg.mxu0
  %v599 = vmax.f32 %v524, 0.0
  %v600 = vmax.f32 %v526, 0.0
  %v601 = vmax.f32 %v595, 0.0
  %v602 = vmax.f32 %v597, 0.0
  %603 = vrot.lane.b32.xlu0 %v599, 17
  %v604 = vpop.permute.xlu0 %603
  %605 = vrot.lane.b32.xlu0 %v600, 17
  %v606 = vpop.permute.xlu0 %605
  %607 = vrot.lane.b32.xlu0 %v601, 17
  %v608 = vpop.permute.xlu0 %607
  %609 = vrot.lane.b32.xlu0 %v602, 17
  %v610 = vpop.permute.xlu0 %609
  %v611 = vsel %vm48, %v608, %v610
  %v612 = vsel %vm48, %v606, %v608
  %v613 = vsel %vm48, %v604, %v606
  %v614 = vsel %vm48, %v610, %v604
  %v615 = vmul.f32 %v614, %v56
  %v616 = vmul.f32 %v613, %v60
  %v617 = vmul.f32 %v612, %v64
  %v618 = vmul.f32 %v611, %v68
  %619 = vst [vmem:[#allocation2] sm:$0xf] %v615
  %620 = vst [vmem:[#allocation2 + $0x8] sm:$0xf] %v616
  %621 = vst [vmem:[#allocation2 + $0x10] sm:$0xf] %v617
  %622 = vst [vmem:[#allocation2 + $0x18] sm:$0xf] %v618
  %623 = vrot.lane.b32.xlu0 %v599, 16
  %v624 = vpop.permute.xlu0 %623
  %625 = vrot.lane.b32.xlu0 %v600, 16
  %v626 = vpop.permute.xlu0 %625
  %627 = vrot.lane.b32.xlu0 %v601, 16
  %v628 = vpop.permute.xlu0 %627
  %629 = vrot.lane.b32.xlu0 %v602, 16
  %v630 = vpop.permute.xlu0 %629
  %v631 = vsel %vm85, %v628, %v630
  %v632 = vsel %vm85, %v626, %v628
  %v633 = vsel %vm85, %v624, %v626
  %v634 = vsel %vm85, %v630, %v624
  %v635 = vmul.f32 %v634, %v93
  %v636 = vmul.f32 %v633, %v97
  %v637 = vmul.f32 %v632, %v101
  %v638 = vmul.f32 %v631, %v105
  %v643 = vrot.slane %v635, 4
  %v644 = vrot.slane %v636, 4
  %v645 = vrot.slane %v637, 4
  %v646 = vrot.slane %v638, 4
  %651 = vst [vmem:[#allocation2] sm:$0xf0] %v643
  %652 = vst [vmem:[#allocation2 + $0x8] sm:$0xf0] %v644
  %653 = vst [vmem:[#allocation2 + $0x10] sm:$0xf0] %v645
  %654 = vst [vmem:[#allocation2 + $0x18] sm:$0xf0] %v646
  %655 = vrot.lane.b32.xlu0 %v599, 15
  %v656 = vpop.permute.xlu0 %655
  %657 = vrot.lane.b32.xlu0 %v600, 15
  %v658 = vpop.permute.xlu0 %657
  %659 = vrot.lane.b32.xlu0 %v601, 15
  %v660 = vpop.permute.xlu0 %659
  %661 = vrot.lane.b32.xlu0 %v602, 15
  %v662 = vpop.permute.xlu0 %661
  %v663 = vsel %vm134, %v660, %v662
  %v664 = vsel %vm134, %v658, %v660
  %v665 = vsel %vm134, %v656, %v658
  %v666 = vsel %vm134, %v662, %v656
  %v667 = vmul.f32 %v666, %v142
  %v668 = vmul.f32 %v665, %v146
  %v669 = vmul.f32 %v664, %v150
  %v670 = vmul.f32 %v663, %v154
  %671 = vst [vmem:[#allocation2 + $0x20] sm:$0xf] %v667
  %672 = vst [vmem:[#allocation2 + $0x28] sm:$0xf] %v668
  %673 = vst [vmem:[#allocation2 + $0x30] sm:$0xf] %v669
  %674 = vst [vmem:[#allocation2 + $0x38] sm:$0xf] %v670
  %675 = vrot.lane.b32.xlu0 %v599, 1
  %v676 = vpop.permute.xlu0 %675
  %677 = vrot.lane.b32.xlu0 %v600, 1
  %v678 = vpop.permute.xlu0 %677
  %679 = vrot.lane.b32.xlu0 %v601, 1
  %v680 = vpop.permute.xlu0 %679
  %681 = vrot.lane.b32.xlu0 %v602, 1
  %v682 = vpop.permute.xlu0 %681
  %v683 = vsel %vm171, %v680, %v682
  %v684 = vsel %vm171, %v678, %v680
  %v685 = vsel %vm171, %v676, %v678
  %v686 = vsel %vm171, %v682, %v676
  %v687 = vmul.f32 %v686, %v179
  %v688 = vmul.f32 %v685, %v183
  %v689 = vmul.f32 %v684, %v187
  %v690 = vmul.f32 %v683, %v191
  %v695 = vrot.slane %v687, 4
  %v696 = vrot.slane %v688, 4
  %v697 = vrot.slane %v689, 4
  %v698 = vrot.slane %v690, 4
  %703 = vst [vmem:[#allocation2 + $0x20] sm:$0xf0] %v695
  %704 = vst [vmem:[#allocation2 + $0x28] sm:$0xf0] %v696
  %705 = vst [vmem:[#allocation2 + $0x30] sm:$0xf0] %v697
  %706 = vst [vmem:[#allocation2 + $0x38] sm:$0xf0] %v698
  %v707 = vmul.f32 %v599, %v215
  %v708 = vmul.f32 %v600, %v219
  %v709 = vmul.f32 %v601, %v223
  %v710 = vmul.f32 %v602, %v227
  %711 = vst [vmem:[#allocation2 + $0x40] sm:$0xf] %v707
  %712 = vst [vmem:[#allocation2 + $0x48] sm:$0xf] %v708
  %713 = vst [vmem:[#allocation2 + $0x50] sm:$0xf] %v709
  %714 = vst [vmem:[#allocation2 + $0x58] sm:$0xf] %v710
  %715 = vrot.lane.b32.xlu0 %v599, 127
  %v716 = vpop.permute.xlu0 %715
  %717 = vrot.lane.b32.xlu0 %v600, 127
  %v718 = vpop.permute.xlu0 %717
  %719 = vrot.lane.b32.xlu0 %v601, 127
  %v720 = vpop.permute.xlu0 %719
  %721 = vrot.lane.b32.xlu0 %v602, 127
  %v722 = vpop.permute.xlu0 %721
  %v723 = vsel %vm256, %v720, %v722
  %v724 = vsel %vm256, %v718, %v720
  %v725 = vsel %vm256, %v716, %v718
  %v726 = vsel %vm256, %v722, %v716
  %v727 = vmul.f32 %v725, %v264
  %v728 = vmul.f32 %v724, %v268
  %v729 = vmul.f32 %v723, %v272
  %v730 = vmul.f32 %v726, %v276
  %v735 = vrot.slane %v727, 4
  %v736 = vrot.slane %v728, 4
  %v737 = vrot.slane %v729, 4
  %v738 = vrot.slane %v730, 4
  %743 = vst [vmem:[#allocation2 + $0x40] sm:$0xf0] %v735
  %744 = vst [vmem:[#allocation2 + $0x48] sm:$0xf0] %v736
  %745 = vst [vmem:[#allocation2 + $0x50] sm:$0xf0] %v737
  %746 = vst [vmem:[#allocation2 + $0x58] sm:$0xf0] %v738
  %747 = vrot.lane.b32.xlu0 %v599, 113
  %v748 = vpop.permute.xlu0 %747
  %749 = vrot.lane.b32.xlu0 %v600, 113
  %v750 = vpop.permute.xlu0 %749
  %751 = vrot.lane.b32.xlu0 %v601, 113
  %v752 = vpop.permute.xlu0 %751
  %753 = vrot.lane.b32.xlu0 %v602, 113
  %v754 = vpop.permute.xlu0 %753
  %v755 = vsel %vm305, %v752, %v754
  %v756 = vsel %vm305, %v750, %v752
  %v757 = vsel %vm305, %v748, %v750
  %v758 = vsel %vm305, %v754, %v748
  %v759 = vmul.f32 %v757, %v313
  %v760 = vmul.f32 %v756, %v317
  %v761 = vmul.f32 %v755, %v321
  %v762 = vmul.f32 %v758, %v325
  %763 = vst [vmem:[#allocation2 + $0x60] sm:$0xf] %v759
  %764 = vst [vmem:[#allocation2 + $0x68] sm:$0xf] %v760
  %765 = vst [vmem:[#allocation2 + $0x70] sm:$0xf] %v761
  %766 = vst [vmem:[#allocation2 + $0x78] sm:$0xf] %v762
  %767 = vrot.lane.b32.xlu0 %v599, 112
  %v768 = vpop.permute.xlu0 %767
  %769 = vrot.lane.b32.xlu0 %v600, 112
  %v770 = vpop.permute.xlu0 %769
  %771 = vrot.lane.b32.xlu0 %v601, 112
  %v772 = vpop.permute.xlu0 %771
  %773 = vrot.lane.b32.xlu0 %v602, 112
  %v774 = vpop.permute.xlu0 %773
  %v775 = vsel %vm342, %v772, %v774
  %v776 = vsel %vm342, %v770, %v772
  %v777 = vsel %vm342, %v768, %v770
  %v778 = vsel %vm342, %v774, %v768
  %v779 = vmul.f32 %v777, %v350
  %v780 = vmul.f32 %v776, %v354
  %v781 = vmul.f32 %v775, %v358
  %v782 = vmul.f32 %v778, %v362
  %v787 = vrot.slane %v779, 4
  %v788 = vrot.slane %v780, 4
  %v789 = vrot.slane %v781, 4
  %v790 = vrot.slane %v782, 4
  %795 = vst [vmem:[#allocation2 + $0x60] sm:$0xf0] %v787
  %796 = vst [vmem:[#allocation2 + $0x68] sm:$0xf0] %v788
  %797 = vst [vmem:[#allocation2 + $0x70] sm:$0xf0] %v789
  %798 = vst [vmem:[#allocation2 + $0x78] sm:$0xf0] %v790
  %799 = vrot.lane.b32.xlu0 %v599, 111
  %v800 = vpop.permute.xlu0 %799
  %801 = vrot.lane.b32.xlu0 %v600, 111
  %v802 = vpop.permute.xlu0 %801
  %803 = vrot.lane.b32.xlu0 %v601, 111
  %v804 = vpop.permute.xlu0 %803
  %805 = vrot.lane.b32.xlu0 %v602, 111
  %v806 = vpop.permute.xlu0 %805
  %v807 = vsel %vm391, %v804, %v806
  %v808 = vsel %vm391, %v802, %v804
  %v809 = vsel %vm391, %v800, %v802
  %v810 = vsel %vm391, %v806, %v800
  %v811 = vmul.f32 %v809, %v399
  %v812 = vmul.f32 %v808, %v403
  %v813 = vmul.f32 %v807, %v407
  %v814 = vmul.f32 %v810, %v411
  %815 = vst [vmem:[#allocation2 + $0x80] sm:$0xf] %v811
  %816 = vst [vmem:[#allocation2 + $0x88] sm:$0xf] %v812
  %817 = vst [vmem:[#allocation2 + $0x90] sm:$0xf] %v813
  %818 = vst [vmem:[#allocation2 + $0x98] sm:$0xf] %v814
  %v819 = vld [vmem:[#allocation2] sm:$0xff]
  %v820 = vld [vmem:[#allocation2 + $0x8] sm:$0xff]
  %v821 = vld [vmem:[#allocation2 + $0x10] sm:$0xff]
  %v822 = vld [vmem:[#allocation2 + $0x18] sm:$0xff]
  %v823 = vld [vmem:[#allocation2 + $0x20] sm:$0xff]
  %v824 = vld [vmem:[#allocation2 + $0x28] sm:$0xff]
  %v825 = vld [vmem:[#allocation2 + $0x30] sm:$0xff]
  %v826 = vld [vmem:[#allocation2 + $0x38] sm:$0xff]
  %v827 = vld [vmem:[#allocation2 + $0x40] sm:$0xff]
  %v828 = vld [vmem:[#allocation2 + $0x48] sm:$0xff]
  %v829 = vld [vmem:[#allocation2 + $0x50] sm:$0xff]
  %v830 = vld [vmem:[#allocation2 + $0x58] sm:$0xff]
  %v831 = vld [vmem:[#allocation2 + $0x60] sm:$0xff]
  %v832 = vld [vmem:[#allocation2 + $0x68] sm:$0xff]
  %v833 = vld [vmem:[#allocation2 + $0x70] sm:$0xff]
  %v834 = vld [vmem:[#allocation2 + $0x78] sm:$0xff]
  %v835 = vld [vmem:[#allocation2 + $0x80] sm:$0x1f]
  %v836 = vld [vmem:[#allocation2 + $0x88] sm:$0x1f]
  %v837 = vld [vmem:[#allocation2 + $0x90] sm:$0x1f]
  %v838 = vld [vmem:[#allocation2 + $0x98] sm:$0x1f]
  %v840 = vsel %vm444, %v835, 0
  %v843 = vsel %vm444, %v836, 0
  %v846 = vsel %vm444, %v837, 0
  %v849 = vsel %vm444, %v838, 0
  %851 = vmatprep.subr.mxu0 0.0
  %852 = vmatpush1.msra.mxu0 0.0
  %853 = vmatprep.subr.mxu0 0.0
  %854 = vmatpush1.msra.mxu0 0.0
  %855 = vmatprep.subr.mxu0 0.0
  %856 = vmatpush1.msra.mxu0 0.0
  %857 = vmatprep.subr.mxu0 0.0
  %858 = vmatpush1.msra.mxu0 0.0
  %859 = vmatprep.subr.mxu0 0.0
  %860 = vmatpush1.msra.mxu0 0.0
  %861 = vmatprep.subr.mxu0 0.0
  %862 = vmatpush1.msra.mxu0 0.0
  %863 = vmatprep.subr.mxu0 0.0
  %864 = vmatpush1.msra.mxu0 0.0
  %865 = vmatprep.subr.mxu0 0.0
  %866 = vmatpush1.msra.mxu0 0.0
  %867 = vmatprep.subr.mxu0 0.0
  %868 = vmatpush1.msra.mxu0 0.0
  %869 = vmatprep.subr.mxu0 0.0
  %870 = vmatpush1.msra.mxu0 0.0
  %871 = vmatprep.subr.mxu0 0.0
  %872 = vmatpush1.msra.mxu0 0.0
  %873 = vmatprep.subr.mxu0 %v843
  %874 = vmatpush1.msra.mxu0 %v840
  %875 = vmatprep.subr.mxu0 %v832
  %876 = vmatpush1.msra.mxu0 %v831
  %877 = vmatprep.subr.mxu0 %v828
  %878 = vmatpush1.msra.mxu0 %v827
  %879 = vmatprep.subr.mxu0 %v824
  %880 = vmatpush1.msra.mxu0 %v823
  %881 = vmatprep.subr.mxu0 %v820
  %882 = vmatpush1.msra.mxu0 %v819
  %883 = vmatprep.subr.mxu0 0.0
  %884 = vmatpush2.msra.mxu0 0.0
  %885 = vmatprep.subr.mxu0 0.0
  %886 = vmatpush2.msra.mxu0 0.0
  %887 = vmatprep.subr.mxu0 0.0
  %888 = vmatpush2.msra.mxu0 0.0
  %889 = vmatprep.subr.mxu0 0.0
  %890 = vmatpush2.msra.mxu0 0.0
  %891 = vmatprep.subr.mxu0 0.0
  %892 = vmatpush2.msra.mxu0 0.0
  %893 = vmatprep.subr.mxu0 0.0
  %894 = vmatpush2.msra.mxu0 0.0
  %895 = vmatprep.subr.mxu0 0.0
  %896 = vmatpush2.msra.mxu0 0.0
  %897 = vmatprep.subr.mxu0 0.0
  %898 = vmatpush2.msra.mxu0 0.0
  %899 = vmatprep.subr.mxu0 0.0
  %900 = vmatpush2.msra.mxu0 0.0
  %901 = vmatprep.subr.mxu0 0.0
  %902 = vmatpush2.msra.mxu0 0.0
  %903 = vmatprep.subr.mxu0 0.0
  %904 = vmatpush2.msra.mxu0 0.0
  %905 = vmatprep.subr.mxu0 0.0
  %906 = vmatpush2.msra.mxu0 0.0
  %907 = vmatprep.subr.mxu0 0.0
  %908 = vmatpush2.msra.mxu0 0.0
  %909 = vmatprep.subr.mxu0 0.0
  %910 = vmatpush2.msra.mxu0 0.0
  %911 = vmatprep.subr.mxu0 0.0
  %912 = vmatpush2.msra.mxu0 0.0
  %913 = vmatprep.subr.mxu0 0.0
  %914 = vmatpush2.msra.mxu0 0.0
  %915 = vmatprep.mubr.f32.mxu0 0.0
  %916 = vmatmul.mubr.f32.gmra.mxu0 %v442
  %v917 = vpop.f32.mrf.mxu0
  %v918 = vadd.f32 0.0, %v917
  %v919 = vpop.f32.mrf.mxu0
  %v920 = vadd.f32 0.0, %v919
  %921 = vdwg.mxu0
  %922 = vmatprep.subr.mxu0 0.0
  %923 = vmatpush1.msra.mxu0 0.0
  %924 = vmatprep.subr.mxu0 0.0
  %925 = vmatpush1.msra.mxu0 0.0
  %926 = vmatprep.subr.mxu0 0.0
  %927 = vmatpush1.msra.mxu0 0.0
  %928 = vmatprep.subr.mxu0 0.0
  %929 = vmatpush1.msra.mxu0 0.0
  %930 = vmatprep.subr.mxu0 0.0
  %931 = vmatpush1.msra.mxu0 0.0
  %932 = vmatprep.subr.mxu0 0.0
  %933 = vmatpush1.msra.mxu0 0.0
  %934 = vmatprep.subr.mxu0 0.0
  %935 = vmatpush1.msra.mxu0 0.0
  %936 = vmatprep.subr.mxu0 0.0
  %937 = vmatpush1.msra.mxu0 0.0
  %938 = vmatprep.subr.mxu0 0.0
  %939 = vmatpush1.msra.mxu0 0.0
  %940 = vmatprep.subr.mxu0 0.0
  %941 = vmatpush1.msra.mxu0 0.0
  %942 = vmatprep.subr.mxu0 0.0
  %943 = vmatpush1.msra.mxu0 0.0
  %944 = vmatprep.subr.mxu0 %v849
  %945 = vmatpush1.msra.mxu0 %v846
  %946 = vmatprep.subr.mxu0 %v834
  %947 = vmatpush1.msra.mxu0 %v833
  %948 = vmatprep.subr.mxu0 %v830
  %949 = vmatpush1.msra.mxu0 %v829
  %950 = vmatprep.subr.mxu0 %v826
  %951 = vmatpush1.msra.mxu0 %v825
  %952 = vmatprep.subr.mxu0 %v822
  %953 = vmatpush1.msra.mxu0 %v821
  %954 = vmatprep.subr.mxu0 0.0
  %955 = vmatpush2.msra.mxu0 0.0
  %956 = vmatprep.subr.mxu0 0.0
  %957 = vmatpush2.msra.mxu0 0.0
  %958 = vmatprep.subr.mxu0 0.0
  %959 = vmatpush2.msra.mxu0 0.0
  %960 = vmatprep.subr.mxu0 0.0
  %961 = vmatpush2.msra.mxu0 0.0
  %962 = vmatprep.subr.mxu0 0.0
  %963 = vmatpush2.msra.mxu0 0.0
  %964 = vmatprep.subr.mxu0 0.0
  %965 = vmatpush2.msra.mxu0 0.0
  %966 = vmatprep.subr.mxu0 0.0
  %967 = vmatpush2.msra.mxu0 0.0
  %968 = vmatprep.subr.mxu0 0.0
  %969 = vmatpush2.msra.mxu0 0.0
  %970 = vmatprep.subr.mxu0 0.0
  %971 = vmatpush2.msra.mxu0 0.0
  %972 = vmatprep.subr.mxu0 0.0
  %973 = vmatpush2.msra.mxu0 0.0
  %974 = vmatprep.subr.mxu0 0.0
  %975 = vmatpush2.msra.mxu0 0.0
  %976 = vmatprep.subr.mxu0 0.0
  %977 = vmatpush2.msra.mxu0 0.0
  %978 = vmatprep.subr.mxu0 0.0
  %979 = vmatpush2.msra.mxu0 0.0
  %980 = vmatprep.subr.mxu0 0.0
  %981 = vmatpush2.msra.mxu0 0.0
  %982 = vmatprep.subr.mxu0 0.0
  %983 = vmatpush2.msra.mxu0 0.0
  %984 = vmatprep.subr.mxu0 0.0
  %985 = vmatpush2.msra.mxu0 0.0
  %986 = vmatprep.mubr.f32.mxu0 0.0
  %987 = vmatmul.mubr.f32.gmra.mxu0 %v442
  %v988 = vpop.f32.mrf.mxu0
  %v989 = vadd.f32 0.0, %v988
  %v990 = vpop.f32.mrf.mxu0
  %v991 = vadd.f32 0.0, %v990
  %992 = vdwg.mxu0
  %v997 = vcombine.low %v918, %v920
  %v998 = vcombine.low %v989, %v991
  %v1001 = vadd.f32 %v14, %v997
  %v1002 = vadd.f32 %v15, %v998
  %1003 = vst [vmem:[%s3] sm:$0xff] %v1001
  %1004 = vst [vmem:[%s3 + $0x8] sm:$0xff] %v1002
  // Predicated region
  $region14: #{resnet_layer_forward.1} parent=0 // pred_check
    _
  $region15: #{resnet_layer_forward.1} parent=0 // pred_check_branch
    %1006 = sbr.rel (0) target = $region17
  $region16: #{resnet_layer_forward.1} parent=0 // pred_region
    _
  $region17: #{resnet_layer_forward.1} parent=0 // pred_fallthru
    _
  // Predicated region
  $region18: #{resnet_layer_forward.1} parent=0 // pred_check
    _
  $region19: #{resnet_layer_forward.1} parent=0 // pred_check_branch
    %1008 = sbr.rel (0) target = $region21
  $region20: #{resnet_layer_forward.1} parent=0 // pred_region
    _
  $region21: #{resnet_layer_forward.1} parent=0 // pred_fallthru
    _

</llo_original>
